<compile_context>
chip_gen: v7x
topology: tpu7x:2x2x1
jax: 0.10.0
libtpu: 0.0.40
codegen_flags: <defaults>
</compile_context>

<pallas_src>
import functools
import math

import jax
import jax.numpy as jnp
from jax.experimental import pallas as pl
from jax.experimental.pallas import tpu as pltpu


# --------------------------------- tiling helpers --------------------------------- #

def _round_up(n, m):
    return ((n + m - 1) // m) * m


def _largest_divisor_tile(n, cap=512, step=8):
    """Largest multiple-of-`step` tile <= cap dividing n (n is assumed a multiple of step)."""
    start = min(cap, _round_up(n, step))
    for t in range(start, step - 1, -step):
        if n % t == 0:
            return t
    return n


def _lane_tile(n, candidates=(512, 256, 128)):
    """Tile for a lane (last) dim: a multiple of 128 dividing n, else the full extent."""
    for t in candidates:
        if n % t == 0:
            return t
    return n


def _attn_tiles(T):
    """(q_tile, kv_tile, padded_T).  Prefer 256-aligned tiles for the v6e/v7x MXU."""
    Tp = _round_up(T, 8)
    if Tp > 256:
        Tp = _round_up(Tp, 128)
    for t in (256, 128):
        if Tp % t == 0 and Tp > t:
            return t, t, Tp
    return Tp, Tp, Tp


def _vmem_limit_bytes():
    """Explicit scoped-VMEM budget: ~75% of physical VMEM (generation-aware), safe fallback."""
    try:
        info = pltpu.get_tpu_info()
        cap = getattr(info, "vmem_capacity_bytes", None)
        if cap:
            return int(cap) * 3 // 4
    except Exception:
        pass
    return 48 * 1024 * 1024   # > v5e/v6e scoped defaults, < v7x 64 MiB physical


# ----------------------------- tiled projection kernels ---------------------------- #

def _qkv_matmul_kernel(x_ref, wq_ref, wk_ref, wv_ref, q_ref, k_ref, v_ref,
                       qacc, kacc, vacc):
    """Fused QKV projection: one x tile, three streamed weight tiles, three f32 accumulators."""
    kk = pl.program_id(2)

    @pl.when(kk == 0)
    def _init():
        qacc[...] = jnp.zeros_like(qacc)
        kacc[...] = jnp.zeros_like(kacc)
        vacc[...] = jnp.zeros_like(vacc)

    x = x_ref[...]
    qacc[...] += jnp.dot(x, wq_ref[...], preferred_element_type=jnp.float32)
    kacc[...] += jnp.dot(x, wk_ref[...], preferred_element_type=jnp.float32)
    vacc[...] += jnp.dot(x, wv_ref[...], preferred_element_type=jnp.float32)

    @pl.when(kk == pl.num_programs(2) - 1)
    def _store():
        q_ref[...] = qacc[...].astype(q_ref.dtype)
        k_ref[...] = kacc[...].astype(k_ref.dtype)
        v_ref[...] = vacc[...].astype(v_ref.dtype)


def _proj_matmul_kernel(x_ref, w_ref, b_ref, o_ref, acc_ref):
    """y = x @ w + b with K streamed on the last ('arbitrary') grid axis."""
    kk = pl.program_id(2)

    @pl.when(kk == 0)
    def _init():
        acc_ref[...] = jnp.broadcast_to(b_ref[...], acc_ref.shape)   # bias in f32

    acc_ref[...] += jnp.dot(x_ref[...], w_ref[...], preferred_element_type=jnp.float32)

    @pl.when(kk == pl.num_programs(2) - 1)
    def _store():
        o_ref[...] = acc_ref[...].astype(o_ref.dtype)


def _qkv_projection(x2d, wq, wk, wv, out_dtype, vmem_limit):
    M, C = x2d.shape
    TM = _largest_divisor_tile(M)
    TN = _lane_tile(C)
    TK = _lane_tile(C)
    grid = (M // TM, C // TN, C // TK)
    shape = jax.ShapeDtypeStruct((M, C), out_dtype)
    x_spec = pl.BlockSpec((TM, TK), lambda i, j, k: (i, k))
    w_spec = pl.BlockSpec((TK, TN), lambda i, j, k: (k, j))
    o_spec = pl.BlockSpec((TM, TN), lambda i, j, k: (i, j))
    return pl.pallas_call(
        _qkv_matmul_kernel,
        out_shape=(shape, shape, shape),
        grid_spec=pltpu.PrefetchScalarGridSpec(
            num_scalar_prefetch=0,
            grid=grid,
            in_specs=[x_spec, w_spec, w_spec, w_spec],
            out_specs=(o_spec, o_spec, o_spec),
            scratch_shapes=[pltpu.VMEM((TM, TN), jnp.float32)] * 3,
        ),
        compiler_params=pltpu.CompilerParams(
            dimension_semantics=("parallel", "parallel", "arbitrary"),
            vmem_limit_bytes=vmem_limit,
        ),
    )(x2d, wq, wk, wv)


def _output_projection(x2d, wp_t, bias_f32, out_dtype, vmem_limit):
    M, C = x2d.shape
    TM = _largest_divisor_tile(M)
    TN = _lane_tile(C)
    TK = _lane_tile(C)
    grid = (M // TM, C // TN, C // TK)
    return pl.pallas_call(
        _proj_matmul_kernel,
        out_shape=jax.ShapeDtypeStruct((M, C), out_dtype),
        grid_spec=pltpu.PrefetchScalarGridSpec(
            num_scalar_prefetch=0,
            grid=grid,
            in_specs=[
                pl.BlockSpec((TM, TK), lambda i, j, k: (i, k)),
                pl.BlockSpec((TK, TN), lambda i, j, k: (k, j)),
                pl.BlockSpec((1, TN), lambda i, j, k: (0, j)),
            ],
            out_specs=pl.BlockSpec((TM, TN), lambda i, j, k: (i, j)),
            scratch_shapes=[pltpu.VMEM((TM, TN), jnp.float32)],
        ),
        compiler_params=pltpu.CompilerParams(
            dimension_semantics=("parallel", "parallel", "arbitrary"),
            vmem_limit_bytes=vmem_limit,
        ),
    )(x2d, wp_t, bias_f32)


# ------------------------------ flash attention kernel ----------------------------- #

def _flash_attn_kernel(q_ref, k_ref, v_ref, o_ref, m_ref, l_ref, acc_ref, *,
                       num_heads, q_tile, kv_tile):
    """One (batch, q-tile, kv-tile) per grid step; online softmax, causal tile skipping."""
    qi = pl.program_id(1)
    ki = pl.program_id(2)
    nk = pl.num_programs(2)

    H = num_heads
    C = q_ref.shape[-1]
    D = C // H
    TQ = q_tile
    TK = kv_tile

    @pl.when(ki == 0)
    def _init():
        m_ref[...] = jnp.full_like(m_ref, -1e30)
        l_ref[...] = jnp.zeros_like(l_ref)
        acc_ref[...] = jnp.zeros_like(acc_ref)

    q_start = qi * TQ
    k_start = ki * TK

    # Causal skip: KV tiles strictly above the diagonal contribute nothing.
    @pl.when(k_start <= q_start + TQ - 1)
    def _process():
        # Additive causal mask for this tile pair, computed once and shared by all heads.
        row = jax.lax.broadcasted_iota(jnp.int32, (TQ, TK), 0) + q_start
        col = jax.lax.broadcasted_iota(jnp.int32, (TQ, TK), 1) + k_start
        mask = jnp.where(col <= row, 0.0, -1e30).astype(jnp.float32)

        q = q_ref[...]                       # (TQ, C)  -- already scaled via Wq
        k = k_ref[...]                       # (TK, C)
        v = v_ref[...]                       # (TK, C)

        # Heads live on the lane axis (lane-dense in/out, no HBM transposes); static loop.
        for h in range(H):
            sl = slice(h * D, (h + 1) * D)
            s = jax.lax.dot_general(
                q[:, sl], k[:, sl],
                dimension_numbers=(((1,), (1,)), ((), ())),
                preferred_element_type=jnp.float32)                     # (TQ, TK)
            s = s + mask

            m_prev = m_ref[:, h:h + 1]                                   # (TQ, 1)
            m_new = jnp.maximum(m_prev, jnp.max(s, axis=-1, keepdims=True))
            alpha = jnp.exp(m_prev - m_new)
            p = jnp.exp(s - m_new)                                       # f32 softmax numerator

            l_ref[:, h:h + 1] = alpha * l_ref[:, h:h + 1] + jnp.sum(p, axis=-1, keepdims=True)
            acc_ref[h] = alpha * acc_ref[h] + jnp.dot(
                p.astype(v.dtype), v[:, sl], preferred_element_type=jnp.float32)   # (TQ, D)
            m_ref[:, h:h + 1] = m_new

    @pl.when(ki == nk - 1)
    def _finalize():
        for h in range(H):
            inv = 1.0 / l_ref[:, h:h + 1]     # exact (review: avoid approx reciprocal here)
            o_ref[:, h * D:(h + 1) * D] = (acc_ref[h] * inv).astype(o_ref.dtype)


def _flash_attention(q, k, v, *, num_heads, q_tile, kv_tile, vmem_limit):
    B, Tp, C = q.shape
    H = num_heads
    D = C // H
    TQ, TK = q_tile, kv_tile
    kernel = functools.partial(_flash_attn_kernel, num_heads=H, q_tile=TQ, kv_tile=TK)

    q_spec = pl.BlockSpec((pl.Squeezed(), TQ, C), lambda b, qi, ki: (b, qi, 0))
    kv_spec = pl.BlockSpec((pl.Squeezed(), TK, C), lambda b, qi, ki: (b, ki, 0))

    return pl.pallas_call(
        kernel,
        out_shape=jax.ShapeDtypeStruct((B, Tp, C), q.dtype),
        grid_spec=pltpu.PrefetchScalarGridSpec(
            num_scalar_prefetch=0,
            grid=(B, Tp // TQ, Tp // TK),     # batch/q-tile parallel (dual-TC), kv last/arbitrary
            in_specs=[q_spec, kv_spec, kv_spec],
            out_specs=pl.BlockSpec((pl.Squeezed(), TQ, C), lambda b, qi, ki: (b, qi, 0)),
            scratch_shapes=[
                pltpu.VMEM((TQ, H), jnp.float32),        # running max  (per-head lanes)
                pltpu.VMEM((TQ, H), jnp.float32),        # running denom
                pltpu.VMEM((H, TQ, D), jnp.float32),     # output accumulator
            ],
        ),
        compiler_params=pltpu.CompilerParams(
            dimension_semantics=("parallel", "parallel", "arbitrary"),
            vmem_limit_bytes=vmem_limit,
        ),
    )(q, k, v)


# ------------------------------------- wrapper ------------------------------------- #

def prepare_params(wq, wk, wv, wp_t, bp, *, num_heads, compute_dtype=None):
    """One-time parameter prep: fold 1/sqrt(head_size) into Wq, cast to compute dtype."""
    C = wq.shape[0]
    D = C // num_heads
    cdt = compute_dtype or wq.dtype
    return dict(
        wq=(wq * (D ** -0.5)).astype(cdt),      # scale folded in -> zero runtime cost
        wk=wk.astype(cdt),
        wv=wv.astype(cdt),
        wp_t=wp_t.astype(cdt),                  # proj Linear stored as W^T
        bp=bp.reshape(1, C).astype(jnp.float32),
    )


def multi_head_attention(x, params, *, num_heads, compute_dtype=None):
    """x: (B, T, C); params from prepare_params.  Accumulation / softmax always f32."""
    B, T, C = x.shape
    assert C % num_heads == 0
    out_dtype = x.dtype
    cdt = compute_dtype or x.dtype
    vmem_limit = _vmem_limit_bytes()

    # Pad T to a tile-friendly length (padded rows are sliced off at the end; padded K/V
    # columns are excluded from real query rows by the causal mask).
    TQ, TK, Tp = _attn_tiles(T)
    if Tp != T:
        x = jnp.pad(x, ((0, 0), (0, Tp - T), (0, 0)))
    M = B * Tp
    x2d = x.reshape(M, C).astype(cdt)

    # 1) Fused QKV projection (x read once, three streamed weights, three lane-dense outputs).
    q2d, k2d, v2d = _qkv_projection(x2d, params["wq"], params["wk"], params["wv"],
                                    cdt, vmem_limit)
    q = q2d.reshape(B, Tp, C)
    k = k2d.reshape(B, Tp, C)
    v = v2d.reshape(B, Tp, C)

    # 2) Flash attention (causal, heads on the lane axis, KV-tiled online softmax).
    attn = _flash_attention(q, k, v, num_heads=num_heads, q_tile=TQ, kv_tile=TK,
                            vmem_limit=vmem_limit)                       # (B, Tp, C)

    # 3) Output projection (+ bias), lane-dense output.
    out2d = _output_projection(attn.reshape(M, C), params["wp_t"], params["bp"],
                               out_dtype, vmem_limit)                    # (M, C)
    out = out2d.reshape(B, Tp, C)
    if Tp != T:
        out = out[:, :T, :]
    # TODO(synk): dropout is identity (eval mode); no in-kernel RNG dropout.
    return out


# ------------------------------------ reference ------------------------------------ #

def reference_mha(x, wq, wk, wv, wp_t, bp, *, num_heads):
    """Pure-JAX reference for correctness checking (matches the PyTorch module, eval mode)."""
    B, T, C = x.shape
    D = C // num_heads
    q = x @ wq
    k = x @ wk
    v = x @ wv
    causal = jnp.tril(jnp.ones((T, T), dtype=bool))
    outs = []
    for h in range(num_heads):
        qh = q[..., h * D:(h + 1) * D]
        kh = k[..., h * D:(h + 1) * D]
        vh = v[..., h * D:(h + 1) * D]
        s = jnp.einsum("btd,bsd->bts", qh, kh) * (D ** -0.5)
        s = jnp.where(causal[None], s, -jnp.inf)
        w = jax.nn.softmax(s, axis=-1)
        outs.append(jnp.einsum("bts,bsd->btd", w, vh))
    cat = jnp.concatenate(outs, axis=-1)
    return cat @ wp_t + bp


if __name__ == "__main__":
    # Small, module-consistent shapes.
    num_heads = 4
    n_embd = 32           # C
    block_size = 8        # T (sequence length == block_size for the causal mask)
    batch = 2
    dropout = 0.1         # identity in eval mode

    key = jax.random.PRNGKey(0)
    kx, kq, kk, kv, kp, kb = jax.random.split(key, 6)

    x = jax.random.normal(kx, (batch, block_size, n_embd), dtype=jnp.float32)

    # Deterministic parameter init (stand-in for nn.Linear weights).
    scale_in = 1.0 / math.sqrt(n_embd)
    wq = jax.random.uniform(kq, (n_embd, n_embd), jnp.float32, -scale_in, scale_in)
    wk = jax.random.uniform(kk, (n_embd, n_embd), jnp.float32, -scale_in, scale_in)
    wv = jax.random.uniform(kv, (n_embd, n_embd), jnp.float32, -scale_in, scale_in)
    # self.proj = nn.Linear(n_embd, n_embd): y = x @ W^T + b; store W^T directly.
    wp_t = jax.random.uniform(kp, (n_embd, n_embd), jnp.float32, -scale_in, scale_in)
    bp = jax.random.uniform(kb, (n_embd,), jnp.float32, -scale_in, scale_in)

    ref = reference_mha(x, wq, wk, wv, wp_t, bp, num_heads=num_heads)

    # f32 path.
    params_f32 = prepare_params(wq, wk, wv, wp_t, bp, num_heads=num_heads)
    out = multi_head_attention(x, params_f32, num_heads=num_heads)
    out = jax.block_until_ready(out)
    assert out.shape == (batch, block_size, n_embd)
    assert jnp.allclose(out, ref, atol=2e-3, rtol=2e-3), "f32 path mismatch vs reference"

    # bf16 MXU-input path (recommended on all generations incl. v5e); f32 accumulation/softmax.
    params_bf16 = prepare_params(wq, wk, wv, wp_t, bp, num_heads=num_heads,
                                 compute_dtype=jnp.bfloat16)
    out_bf16 = multi_head_attention(x, params_bf16, num_heads=num_heads,
                                    compute_dtype=jnp.bfloat16)
    out_bf16 = jax.block_until_ready(out_bf16)
    assert jnp.allclose(out_bf16.astype(jnp.float32), ref, atol=5e-2, rtol=5e-2), \
        "bf16 path mismatch vs reference"

    # Padding path: non-tile-friendly sequence length (T=6 -> padded to 8, result sliced).
    T2 = 6
    x2 = x[:, :T2, :]
    ref2 = reference_mha(x2, wq, wk, wv, wp_t, bp, num_heads=num_heads)
    out2 = multi_head_attention(x2, params_f32, num_heads=num_heads)
    out2 = jax.block_until_ready(out2)
    assert out2.shape == (batch, T2, n_embd)
    assert jnp.allclose(out2, ref2, atol=2e-3, rtol=2e-3), "padded-T path mismatch vs reference"

    print("KERNEL_OK")
</pallas_src>

<mosaic_0001>
module attributes {stable_mosaic.version = 11 : i64} {
  func.func @_qkv_matmul_kernel(%arg0: i32, %arg1: i32, %arg2: i32, %arg3: memref<16x32xf32, #tpu.memory_space<vmem>>, %arg4: memref<32x32xf32, #tpu.memory_space<vmem>>, %arg5: memref<32x32xf32, #tpu.memory_space<vmem>>, %arg6: memref<32x32xf32, #tpu.memory_space<vmem>>, %arg7: memref<16x32xf32, #tpu.memory_space<vmem>>, %arg8: memref<16x32xf32, #tpu.memory_space<vmem>>, %arg9: memref<16x32xf32, #tpu.memory_space<vmem>>, %arg10: memref<16x32xf32, #tpu.memory_space<vmem>>, %arg11: memref<16x32xf32, #tpu.memory_space<vmem>>, %arg12: memref<16x32xf32, #tpu.memory_space<vmem>>) attributes {dimension_semantics = [#tpu.dimension_semantics<parallel>, #tpu.dimension_semantics<parallel>, #tpu.dimension_semantics<arbitrary>], iteration_bounds = array<i64: 1, 1, 1>, scalar_prefetch = 0 : i64, scratch_operands = 3 : i64, tpu.core_type = #tpu.core_type<tc>, window_params = [{transform_indices = @transform_0, window_bounds = array<i64: 16, 32>}, {transform_indices = @transform_1, window_bounds = array<i64: 32, 32>}, {transform_indices = @transform_2, window_bounds = array<i64: 32, 32>}, {transform_indices = @transform_3, window_bounds = array<i64: 32, 32>}, {transform_indices = @transform_4, window_bounds = array<i64: 16, 32>}, {transform_indices = @transform_5, window_bounds = array<i64: 16, 32>}, {transform_indices = @transform_6, window_bounds = array<i64: 16, 32>}]} {
    %c0_i32 = arith.constant 0 : i32
    %0 = arith.cmpi eq, %arg2, %c0_i32 : i32
    %1 = arith.extui %0 : i1 to i32
    %c0_i32_0 = arith.constant 0 : i32
    %2 = arith.cmpi ne, %1, %c0_i32_0 : i32
    scf.if %2 {
      %cst_24 = arith.constant 0.000000e+00 : f32
      %22 = vector.broadcast %cst_24 : f32 to vector<16x32xf32>
      %c0_25 = arith.constant 0 : index
      %c0_26 = arith.constant 0 : index
      %23 = vector.load %arg10[%c0_25, %c0_26] : memref<16x32xf32, #tpu.memory_space<vmem>>, vector<16x32xf32>
      tpu.vector_store %arg10[%c0_25, %c0_26], %22 {strides = array<i32>} : memref<16x32xf32, #tpu.memory_space<vmem>>, vector<16x32xf32>,
      %cst_27 = arith.constant 0.000000e+00 : f32
      %24 = vector.broadcast %cst_27 : f32 to vector<16x32xf32>
      %c0_28 = arith.constant 0 : index
      %c0_29 = arith.constant 0 : index
      %25 = vector.load %arg11[%c0_28, %c0_29] : memref<16x32xf32, #tpu.memory_space<vmem>>, vector<16x32xf32>
      tpu.vector_store %arg11[%c0_28, %c0_29], %24 {strides = array<i32>} : memref<16x32xf32, #tpu.memory_space<vmem>>, vector<16x32xf32>,
      %cst_30 = arith.constant 0.000000e+00 : f32
      %26 = vector.broadcast %cst_30 : f32 to vector<16x32xf32>
      %c0_31 = arith.constant 0 : index
      %c0_32 = arith.constant 0 : index
      %27 = vector.load %arg12[%c0_31, %c0_32] : memref<16x32xf32, #tpu.memory_space<vmem>>, vector<16x32xf32>
      tpu.vector_store %arg12[%c0_31, %c0_32], %26 {strides = array<i32>} : memref<16x32xf32, #tpu.memory_space<vmem>>, vector<16x32xf32>,
    } else {
    }
    %c0 = arith.constant 0 : index
    %c0_1 = arith.constant 0 : index
    %3 = vector.load %arg3[%c0, %c0_1] : memref<16x32xf32, #tpu.memory_space<vmem>>, vector<16x32xf32>
    %c0_2 = arith.constant 0 : index
    %c0_3 = arith.constant 0 : index
    %4 = vector.load %arg10[%c0_2, %c0_3] : memref<16x32xf32, #tpu.memory_space<vmem>>, vector<16x32xf32>
    %c0_4 = arith.constant 0 : index
    %c0_5 = arith.constant 0 : index
    %5 = vector.load %arg4[%c0_4, %c0_5] : memref<32x32xf32, #tpu.memory_space<vmem>>, vector<32x32xf32>
    %cst = arith.constant dense<0.000000e+00> : vector<16x32xf32>
    %6 = tpu.matmul %3, %5, %cst {dimension_numbers = #tpu.dot_dimension_numbers<[1], [0], [0], [1], [0, 0, 1, 1], [], []>} : vector<16x32xf32>, vector<32x32xf32>, vector<16x32xf32> -> vector<16x32xf32>
    %7 = arith.addf %4, %6 : vector<16x32xf32>
    %c0_6 = arith.constant 0 : index
    %c0_7 = arith.constant 0 : index
    %8 = vector.load %arg10[%c0_6, %c0_7] : memref<16x32xf32, #tpu.memory_space<vmem>>, vector<16x32xf32>
    tpu.vector_store %arg10[%c0_6, %c0_7], %7 {strides = array<i32>} : memref<16x32xf32, #tpu.memory_space<vmem>>, vector<16x32xf32>,
    %c0_8 = arith.constant 0 : index
    %c0_9 = arith.constant 0 : index
    %9 = vector.load %arg11[%c0_8, %c0_9] : memref<16x32xf32, #tpu.memory_space<vmem>>, vector<16x32xf32>
    %c0_10 = arith.constant 0 : index
    %c0_11 = arith.constant 0 : index
    %10 = vector.load %arg5[%c0_10, %c0_11] : memref<32x32xf32, #tpu.memory_space<vmem>>, vector<32x32xf32>
    %cst_12 = arith.constant dense<0.000000e+00> : vector<16x32xf32>
    %11 = tpu.matmul %3, %10, %cst_12 {dimension_numbers = #tpu.dot_dimension_numbers<[1], [0], [0], [1], [0, 0, 1, 1], [], []>} : vector<16x32xf32>, vector<32x32xf32>, vector<16x32xf32> -> vector<16x32xf32>
    %12 = arith.addf %9, %11 : vector<16x32xf32>
    %c0_13 = arith.constant 0 : index
    %c0_14 = arith.constant 0 : index
    %13 = vector.load %arg11[%c0_13, %c0_14] : memref<16x32xf32, #tpu.memory_space<vmem>>, vector<16x32xf32>
    tpu.vector_store %arg11[%c0_13, %c0_14], %12 {strides = array<i32>} : memref<16x32xf32, #tpu.memory_space<vmem>>, vector<16x32xf32>,
    %c0_15 = arith.constant 0 : index
    %c0_16 = arith.constant 0 : index
    %14 = vector.load %arg12[%c0_15, %c0_16] : memref<16x32xf32, #tpu.memory_space<vmem>>, vector<16x32xf32>
    %c0_17 = arith.constant 0 : index
    %c0_18 = arith.constant 0 : index
    %15 = vector.load %arg6[%c0_17, %c0_18] : memref<32x32xf32, #tpu.memory_space<vmem>>, vector<32x32xf32>
    %cst_19 = arith.constant dense<0.000000e+00> : vector<16x32xf32>
    %16 = tpu.matmul %3, %15, %cst_19 {dimension_numbers = #tpu.dot_dimension_numbers<[1], [0], [0], [1], [0, 0, 1, 1], [], []>} : vector<16x32xf32>, vector<32x32xf32>, vector<16x32xf32> -> vector<16x32xf32>
    %17 = arith.addf %14, %16 : vector<16x32xf32>
    %c0_20 = arith.constant 0 : index
    %c0_21 = arith.constant 0 : index
    %18 = vector.load %arg12[%c0_20, %c0_21] : memref<16x32xf32, #tpu.memory_space<vmem>>, vector<16x32xf32>
    tpu.vector_store %arg12[%c0_20, %c0_21], %17 {strides = array<i32>} : memref<16x32xf32, #tpu.memory_space<vmem>>, vector<16x32xf32>,
    %c0_i32_22 = arith.constant 0 : i32
    %19 = arith.cmpi eq, %arg2, %c0_i32_22 : i32
    %20 = arith.extui %19 : i1 to i32
    %c0_i32_23 = arith.constant 0 : i32
    %21 = arith.cmpi ne, %20, %c0_i32_23 : i32
    scf.if %21 {
      %c0_24 = arith.constant 0 : index
      %c0_25 = arith.constant 0 : index
      %22 = vector.load %arg10[%c0_24, %c0_25] : memref<16x32xf32, #tpu.memory_space<vmem>>, vector<16x32xf32>
      %c0_26 = arith.constant 0 : index
      %c0_27 = arith.constant 0 : index
      %23 = vector.load %arg7[%c0_26, %c0_27] : memref<16x32xf32, #tpu.memory_space<vmem>>, vector<16x32xf32>
      tpu.vector_store %arg7[%c0_26, %c0_27], %22 {strides = array<i32>} : memref<16x32xf32, #tpu.memory_space<vmem>>, vector<16x32xf32>,
      %c0_28 = arith.constant 0 : index
      %c0_29 = arith.constant 0 : index
      %24 = vector.load %arg11[%c0_28, %c0_29] : memref<16x32xf32, #tpu.memory_space<vmem>>, vector<16x32xf32>
      %c0_30 = arith.constant 0 : index
      %c0_31 = arith.constant 0 : index
      %25 = vector.load %arg8[%c0_30, %c0_31] : memref<16x32xf32, #tpu.memory_space<vmem>>, vector<16x32xf32>
      tpu.vector_store %arg8[%c0_30, %c0_31], %24 {strides = array<i32>} : memref<16x32xf32, #tpu.memory_space<vmem>>, vector<16x32xf32>,
      %c0_32 = arith.constant 0 : index
      %c0_33 = arith.constant 0 : index
      %26 = vector.load %arg12[%c0_32, %c0_33] : memref<16x32xf32, #tpu.memory_space<vmem>>, vector<16x32xf32>
      %c0_34 = arith.constant 0 : index
      %c0_35 = arith.constant 0 : index
      %27 = vector.load %arg9[%c0_34, %c0_35] : memref<16x32xf32, #tpu.memory_space<vmem>>, vector<16x32xf32>
      tpu.vector_store %arg9[%c0_34, %c0_35], %26 {strides = array<i32>} : memref<16x32xf32, #tpu.memory_space<vmem>>, vector<16x32xf32>,
    } else {
    }
    return
  }
  func.func @transform_0(%arg0: i32, %arg1: i32, %arg2: i32) -> (i32, i32) {
    %c0_i32 = arith.constant 0 : i32
    return %arg0, %arg2 : i32, i32
  }
  func.func @transform_1(%arg0: i32, %arg1: i32, %arg2: i32) -> (i32, i32) {
    %c0_i32 = arith.constant 0 : i32
    return %arg2, %arg1 : i32, i32
  }
  func.func @transform_2(%arg0: i32, %arg1: i32, %arg2: i32) -> (i32, i32) {
    %c0_i32 = arith.constant 0 : i32
    return %arg2, %arg1 : i32, i32
  }
  func.func @transform_3(%arg0: i32, %arg1: i32, %arg2: i32) -> (i32, i32) {
    %c0_i32 = arith.constant 0 : i32
    return %arg2, %arg1 : i32, i32
  }
  func.func @transform_4(%arg0: i32, %arg1: i32, %arg2: i32) -> (i32, i32) {
    %c0_i32 = arith.constant 0 : i32
    return %arg0, %arg1 : i32, i32
  }
  func.func @transform_5(%arg0: i32, %arg1: i32, %arg2: i32) -> (i32, i32) {
    %c0_i32 = arith.constant 0 : i32
    return %arg0, %arg1 : i32, i32
  }
  func.func @transform_6(%arg0: i32, %arg1: i32, %arg2: i32) -> (i32, i32) {
    %c0_i32 = arith.constant 0 : i32
    return %arg0, %arg1 : i32, i32
  }
}

</mosaic_0001>

<llo_original>
// kernel: tpu_custom_call.1
$region0: #{tpu_custom_call.1}
  #allocation0 [shape = 'u32[]', space=smem, size = 0x4, offset = 0x4, fixed_abs, tag = 'smem constant byte address 0x4 - core index']
  #allocation1 [shape = 'u32[144,128]{1,0:T(1,128)}', space=vmem, size = 0x12000, scoped, tag = 'internal scratch']
  #allocation2 [shape = 'f32[16,32]{1,0:T(8,128)}', space=vmem, size = 0x2000, scoped, tag = 'scratch operand']
  #allocation3 [shape = 'f32[16,32]{1,0:T(8,128)}', space=vmem, size = 0x2000, scoped, tag = 'scratch operand']
  #allocation4 [shape = 'f32[16,32]{1,0:T(8,128)}', space=vmem, size = 0x2000, scoped, tag = 'scratch operand']
  %s0 = inlined_call_operand.hbm [shape: f32[16,32], index: 0, kind: input, shape index: {}]
  %s1 = inlined_call_operand.hbm [shape: f32[32,32], index: 1, kind: input, shape index: {}]
  %s2 = inlined_call_operand.hbm [shape: f32[32,32], index: 2, kind: input, shape index: {}]
  %s3 = inlined_call_operand.hbm [shape: f32[32,32], index: 3, kind: input, shape index: {}]
  %s4 = inlined_call_operand.hbm [shape: f32[16,32], index: 4, kind: output, shape index: {0}]
  %s5 = inlined_call_operand.hbm [shape: f32[16,32], index: 5, kind: output, shape index: {1}]
  %s6 = inlined_call_operand.hbm [shape: f32[16,32], index: 6, kind: output, shape index: {2}]
  %7 = xla_tuple %s4, %s5, %s6
  %s8 = sld [smem:[#allocation0]]
  $region66: #{tpu_custom_call.1} parent=0
    _
  %s10 = ssub.s32 1, %s8
  %s11 = scalar_select 0, %s10, %s8
  $region1: #{tpu_custom_call.1} parent=0
    #allocation5 [shape = 'u8[8192]{0}', space=vmem, size = 0x2000, scoped, tag = 'input window, operand 0, single buffered']
    #allocation6 [shape = 's32[1]{0}', space=sflag, size = 0x4, scoped, tag = 'scoped memory for tpu_custom_call.1']
    #allocation7 [shape = 's32[1]{0}', space=sflag, size = 0x4, scoped, tag = 'scoped memory for tpu_custom_call.1']
    #allocation8 [shape = 'u8[16384]{0}', space=vmem, size = 0x4000, scoped, tag = 'input window, operand 1, single buffered']
    #allocation9 [shape = 's32[1]{0}', space=sflag, size = 0x4, scoped, tag = 'scoped memory for tpu_custom_call.1']
    #allocation10 [shape = 'u8[16384]{0}', space=vmem, size = 0x4000, scoped, tag = 'input window, operand 2, single buffered']
    #allocation11 [shape = 'u8[16384]{0}', space=vmem, size = 0x4000, scoped, tag = 'input window, operand 3, single buffered']
    #allocation12 [shape = 's32[1]{0}', space=sflag, size = 0x4, scoped, tag = 'scoped memory for tpu_custom_call.1']
    #allocation13 [shape = 'u8[8192]{0}', space=vmem, size = 0x2000, scoped, tag = 'output window, operand 0, single buffered']
    #allocation14 [shape = 'u8[8192]{0}', space=vmem, size = 0x2000, scoped, tag = 'output window, operand 1, single buffered']
    #allocation15 [shape = 's32[1]{0}', space=sflag, size = 0x4, scoped, tag = 'scoped memory for tpu_custom_call.1']
    #allocation16 [shape = 'u8[8192]{0}', space=vmem, size = 0x2000, scoped, tag = 'output window, operand 2, single buffered']
    %12 = vsyncpa [#allocation6], 0
    %13 = vsyncpa [#allocation9], 0
    %14 = vsyncpa [#allocation12], 0
    %15 = vsyncpa [#allocation7], 0
    %16 = vsyncpa [#allocation15], 0
    // Predicated region
    $region2: #{tpu_custom_call.1} parent=1 // pred_check
      _
    $region3: #{tpu_custom_call.1} parent=1 // pred_check_branch
      %18 = sbr.rel (0) target = $region5
    $region4: #{tpu_custom_call.1} parent=1 // pred_region
      %s20 = ssub.s32 256, 256
      %21 = vsyncadd [#allocation6], %s20
      %s22 = sshll.u32 [#allocation5], 4
      %s23 = int_to_ptr.vmem [resolvable:$true] %s22
      %28 = dma.hbm_to_vmem [thread:$0]  %s0, 256, %s23, [#allocation6], 128, 128, 8
    $region5: #{tpu_custom_call.1} parent=1 // pred_fallthru
      _
    // Predicated region
    $region6: #{tpu_custom_call.1} parent=1 // pred_check
      _
    $region7: #{tpu_custom_call.1} parent=1 // pred_check_branch
      %30 = sbr.rel (0) target = $region9
    $region8: #{tpu_custom_call.1} parent=1 // pred_region
      %s32 = ssub.s32 512, 512
      %33 = vsyncadd [#allocation9], %s32
      %s34 = sshll.u32 [#allocation8], 4
      %s35 = int_to_ptr.vmem [resolvable:$true] %s34
      %40 = dma.hbm_to_vmem [thread:$0]  %s1, 512, %s35, [#allocation9], 128, 128, 8
    $region9: #{tpu_custom_call.1} parent=1 // pred_fallthru
      _
    // Predicated region
    $region10: #{tpu_custom_call.1} parent=1 // pred_check
      _
    $region11: #{tpu_custom_call.1} parent=1 // pred_check_branch
      %42 = sbr.rel (0) target = $region13
    $region12: #{tpu_custom_call.1} parent=1 // pred_region
      %s44 = ssub.s32 512, 512
      %45 = vsyncadd [#allocation9], %s44
      %s46 = sshll.u32 [#allocation10], 4
      %s47 = int_to_ptr.vmem [resolvable:$true] %s46
      %52 = dma.hbm_to_vmem [thread:$0]  %s2, 512, %s47, [#allocation9], 128, 128, 8
    $region13: #{tpu_custom_call.1} parent=1 // pred_fallthru
      _
    // Predicated region
    $region14: #{tpu_custom_call.1} parent=1 // pred_check
      _
    $region15: #{tpu_custom_call.1} parent=1 // pred_check_branch
      %54 = sbr.rel (0) target = $region17
    $region16: #{tpu_custom_call.1} parent=1 // pred_region
      %s56 = ssub.s32 512, 512
      %57 = vsyncadd [#allocation12], %s56
      %s58 = sshll.u32 [#allocation11], 4
      %s59 = int_to_ptr.vmem [resolvable:$true] %s58
      %64 = dma.hbm_to_vmem [thread:$0]  %s3, 512, %s59, [#allocation12], 128, 128, 8
    $region17: #{tpu_custom_call.1} parent=1 // pred_fallthru
      _
    // Predicated region
    $region18: #{tpu_custom_call.1} parent=1 // pred_check
      _
    $region19: #{tpu_custom_call.1} parent=1 // pred_check_branch
      %66 = sbr.rel (0) target = $region21
    $region20: #{tpu_custom_call.1} parent=1 // pred_region
      %67 = dma.done [#allocation6], 256
    $region21: #{tpu_custom_call.1} parent=1 // pred_fallthru
      _
    // Predicated region
    $region22: #{tpu_custom_call.1} parent=1 // pred_check
      _
    $region23: #{tpu_custom_call.1} parent=1 // pred_check_branch
      %69 = sbr.rel (0) target = $region25
    $region24: #{tpu_custom_call.1} parent=1 // pred_region
      %70 = dma.done [#allocation9], 512
    $region25: #{tpu_custom_call.1} parent=1 // pred_fallthru
      _
    // Predicated region
    $region26: #{tpu_custom_call.1} parent=1 // pred_check
      _
    $region27: #{tpu_custom_call.1} parent=1 // pred_check_branch
      %72 = sbr.rel (0) target = $region29
    $region28: #{tpu_custom_call.1} parent=1 // pred_region
      %73 = dma.done [#allocation9], 512
    $region29: #{tpu_custom_call.1} parent=1 // pred_fallthru
      _
    // Predicated region
    $region30: #{tpu_custom_call.1} parent=1 // pred_check
      _
    $region31: #{tpu_custom_call.1} parent=1 // pred_check_branch
      %75 = sbr.rel (0) target = $region33
    $region32: #{tpu_custom_call.1} parent=1 // pred_region
      %76 = dma.done [#allocation12], 512
    $region33: #{tpu_custom_call.1} parent=1 // pred_fallthru
      _
    %p77 = scmp.eq.s32.totalorder 0, 0
    // Predicated region
    $region34: #{tpu_custom_call.1} parent=1 // pred_check
      %p78 = pneg %p77
    $region35: #{tpu_custom_call.1} parent=1 // pred_check_branch
      %80 = sbr.rel (%p78) target = $region37
    $region36: #{tpu_custom_call.1} parent=1 // pred_region
      %vm81 = vcmask 261120
      %82 = vst.msk [vmem:[#allocation2] sm:$0xff] %vm81, 0.0
      %83 = vst.msk [vmem:[#allocation2 + $0x8] sm:$0xff] %vm81, 0.0
      %84 = vst.msk [vmem:[#allocation3] sm:$0xff] %vm81, 0.0
      %85 = vst.msk [vmem:[#allocation3 + $0x8] sm:$0xff] %vm81, 0.0
      %86 = vst.msk [vmem:[#allocation4] sm:$0xff] %vm81, 0.0
      %87 = vst.msk [vmem:[#allocation4 + $0x8] sm:$0xff] %vm81, 0.0
    $region37: #{tpu_custom_call.1} parent=1 // pred_fallthru
      _
    %v88 = vld [vmem:[#allocation5] sm:$0xff]
    %v89 = vld [vmem:[#allocation5 + $0x8] sm:$0xff]
    %v90 = vld [vmem:[#allocation2] sm:$0xff]
    %v91 = vld [vmem:[#allocation2 + $0x8] sm:$0xff]
    %v92 = vld [vmem:[#allocation8] sm:$0xff]
    %v93 = vld [vmem:[#allocation8 + $0x8] sm:$0xff]
    %v94 = vld [vmem:[#allocation8 + $0x10] sm:$0xff]
    %v95 = vld [vmem:[#allocation8 + $0x18] sm:$0xff]
    %vm96 = vcmask 261120
    %v98 = vsel %vm96, %v88, 0
    %v101 = vsel %vm96, %v89, 0
    %103 = vmatprep.subr.mxu0 0.0
    %104 = vmatpush1.msra.mxu0 %v92
    %105 = vmatprep.subr.mxu0 0.0
    %106 = vmatpush1.msra.mxu0 %v93
    %107 = vmatprep.subr.mxu0 0.0
    %108 = vmatpush1.msra.mxu0 %v94
    %109 = vmatprep.subr.mxu0 0.0
    %110 = vmatpush1.msra.mxu0 %v95
    %111 = vmatprep.subr.mxu0 0.0
    %112 = vmatpush1.msra.mxu0 0.0
    %113 = vmatprep.subr.mxu0 0.0
    %114 = vmatpush1.msra.mxu0 0.0
    %115 = vmatprep.subr.mxu0 0.0
    %116 = vmatpush1.msra.mxu0 0.0
    %117 = vmatprep.subr.mxu0 0.0
    %118 = vmatpush1.msra.mxu0 0.0
    %119 = vmatprep.subr.mxu0 0.0
    %120 = vmatpush1.msra.mxu0 0.0
    %121 = vmatprep.subr.mxu0 0.0
    %122 = vmatpush1.msra.mxu0 0.0
    %123 = vmatprep.subr.mxu0 0.0
    %124 = vmatpush1.msra.mxu0 0.0
    %125 = vmatprep.subr.mxu0 0.0
    %126 = vmatpush1.msra.mxu0 0.0
    %127 = vmatprep.subr.mxu0 0.0
    %128 = vmatpush1.msra.mxu0 0.0
    %129 = vmatprep.subr.mxu0 0.0
    %130 = vmatpush1.msra.mxu0 0.0
    %131 = vmatprep.subr.mxu0 0.0
    %132 = vmatpush1.msra.mxu0 0.0
    %133 = vmatprep.subr.mxu0 0.0
    %134 = vmatpush1.msra.mxu0 0.0
    %135 = vmatprep.subr.mxu0 0.0
    %136 = vmatpush1.msra.mxu0 0.0
    %137 = vmatprep.subr.mxu0 0.0
    %138 = vmatpush1.msra.mxu0 0.0
    %139 = vmatprep.subr.mxu0 0.0
    %140 = vmatpush1.msra.mxu0 0.0
    %141 = vmatprep.subr.mxu0 0.0
    %142 = vmatpush1.msra.mxu0 0.0
    %143 = vmatprep.subr.mxu0 0.0
    %144 = vmatpush1.msra.mxu0 0.0
    %145 = vmatprep.subr.mxu0 0.0
    %146 = vmatpush1.msra.mxu0 0.0
    %147 = vmatprep.subr.mxu0 0.0
    %148 = vmatpush1.msra.mxu0 0.0
    %149 = vmatprep.subr.mxu0 0.0
    %150 = vmatpush1.msra.mxu0 0.0
    %151 = vmatprep.subr.mxu0 0.0
    %152 = vmatpush1.msra.mxu0 0.0
    %153 = vmatprep.subr.mxu0 0.0
    %154 = vmatpush1.msra.mxu0 0.0
    %155 = vmatprep.subr.mxu0 0.0
    %156 = vmatpush1.msra.mxu0 0.0
    %157 = vmatprep.subr.mxu0 0.0
    %158 = vmatpush1.msra.mxu0 0.0
    %159 = vmatprep.subr.mxu0 0.0
    %160 = vmatpush1.msra.mxu0 0.0
    %161 = vmatprep.subr.mxu0 0.0
    %162 = vmatpush1.msra.mxu0 0.0
    %163 = vmatprep.subr.mxu0 0.0
    %164 = vmatpush1.msra.mxu0 0.0
    %165 = vmatprep.subr.mxu0 0.0
    %166 = vmatpush1.msra.mxu0 0.0
    %167 = vmatprep.mubr.f32.mxu0 0.0
    %168 = vmatmul.mubr.f32.gmra.mrb[0].mxu0 %v98
    %v169 = vpop.f32.mrb[0].mxu0
    %v170 = vadd.f32 0.0, %v169
    %v171 = vpop.f32.mrb[0].mxu0
    %172 = vmatprep.mubr.f32.mxu0 0.0
    %173 = vmatmul.mubr.f32.gmra.mrb[0].mxu0 %v101
    %v174 = vpop.f32.mrb[0].mxu0
    %v175 = vadd.f32 0.0, %v174
    %v176 = vpop.f32.mrb[0].mxu0
    %177 = vdwg.mxu0
    %v178 = vadd.f32 %v90, %v170
    %v179 = vadd.f32 %v91, %v175
    %180 = vst.msk [vmem:[#allocation2] sm:$0xff] %vm96, %v178
    %181 = vst.msk [vmem:[#allocation2 + $0x8] sm:$0xff] %vm96, %v179
    %v182 = vld [vmem:[#allocation3] sm:$0xff]
    %v183 = vld [vmem:[#allocation3 + $0x8] sm:$0xff]
    %v184 = vld [vmem:[#allocation10] sm:$0xff]
    %v185 = vld [vmem:[#allocation10 + $0x8] sm:$0xff]
    %v186 = vld [vmem:[#allocation10 + $0x10] sm:$0xff]
    %v187 = vld [vmem:[#allocation10 + $0x18] sm:$0xff]
    %188 = vmatprep.subr.mxu0 0.0
    %189 = vmatpush1.msra.mxu0 %v184
    %190 = vmatprep.subr.mxu0 0.0
    %191 = vmatpush1.msra.mxu0 %v185
    %192 = vmatprep.subr.mxu0 0.0
    %193 = vmatpush1.msra.mxu0 %v186
    %194 = vmatprep.subr.mxu0 0.0
    %195 = vmatpush1.msra.mxu0 %v187
    %196 = vmatprep.subr.mxu0 0.0
    %197 = vmatpush1.msra.mxu0 0.0
    %198 = vmatprep.subr.mxu0 0.0
    %199 = vmatpush1.msra.mxu0 0.0
    %200 = vmatprep.subr.mxu0 0.0
    %201 = vmatpush1.msra.mxu0 0.0
    %202 = vmatprep.subr.mxu0 0.0
    %203 = vmatpush1.msra.mxu0 0.0
    %204 = vmatprep.subr.mxu0 0.0
    %205 = vmatpush1.msra.mxu0 0.0
    %206 = vmatprep.subr.mxu0 0.0
    %207 = vmatpush1.msra.mxu0 0.0
    %208 = vmatprep.subr.mxu0 0.0
    %209 = vmatpush1.msra.mxu0 0.0
    %210 = vmatprep.subr.mxu0 0.0
    %211 = vmatpush1.msra.mxu0 0.0
    %212 = vmatprep.subr.mxu0 0.0
    %213 = vmatpush1.msra.mxu0 0.0
    %214 = vmatprep.subr.mxu0 0.0
    %215 = vmatpush1.msra.mxu0 0.0
    %216 = vmatprep.subr.mxu0 0.0
    %217 = vmatpush1.msra.mxu0 0.0
    %218 = vmatprep.subr.mxu0 0.0
    %219 = vmatpush1.msra.mxu0 0.0
    %220 = vmatprep.subr.mxu0 0.0
    %221 = vmatpush1.msra.mxu0 0.0
    %222 = vmatprep.subr.mxu0 0.0
    %223 = vmatpush1.msra.mxu0 0.0
    %224 = vmatprep.subr.mxu0 0.0
    %225 = vmatpush1.msra.mxu0 0.0
    %226 = vmatprep.subr.mxu0 0.0
    %227 = vmatpush1.msra.mxu0 0.0
    %228 = vmatprep.subr.mxu0 0.0
    %229 = vmatpush1.msra.mxu0 0.0
    %230 = vmatprep.subr.mxu0 0.0
    %231 = vmatpush1.msra.mxu0 0.0
    %232 = vmatprep.subr.mxu0 0.0
    %233 = vmatpush1.msra.mxu0 0.0
    %234 = vmatprep.subr.mxu0 0.0
    %235 = vmatpush1.msra.mxu0 0.0
    %236 = vmatprep.subr.mxu0 0.0
    %237 = vmatpush1.msra.mxu0 0.0
    %238 = vmatprep.subr.mxu0 0.0
    %239 = vmatpush1.msra.mxu0 0.0
    %240 = vmatprep.subr.mxu0 0.0
    %241 = vmatpush1.msra.mxu0 0.0
    %242 = vmatprep.subr.mxu0 0.0
    %243 = vmatpush1.msra.mxu0 0.0
    %244 = vmatprep.subr.mxu0 0.0
    %245 = vmatpush1.msra.mxu0 0.0
    %246 = vmatprep.subr.mxu0 0.0
    %247 = vmatpush1.msra.mxu0 0.0
    %248 = vmatprep.subr.mxu0 0.0
    %249 = vmatpush1.msra.mxu0 0.0
    %250 = vmatprep.subr.mxu0 0.0
    %251 = vmatpush1.msra.mxu0 0.0
    %252 = vmatprep.mubr.f32.mxu0 0.0
    %253 = vmatmul.mubr.f32.gmra.mrb[0].mxu0 %v98
    %v254 = vpop.f32.mrb[0].mxu0
    %v255 = vadd.f32 0.0, %v254
    %v256 = vpop.f32.mrb[0].mxu0
    %257 = vmatprep.mubr.f32.mxu0 0.0
    %258 = vmatmul.mubr.f32.gmra.mrb[0].mxu0 %v101
    %v259 = vpop.f32.mrb[0].mxu0
    %v260 = vadd.f32 0.0, %v259
    %v261 = vpop.f32.mrb[0].mxu0
    %262 = vdwg.mxu0
    %v263 = vadd.f32 %v182, %v255
    %v264 = vadd.f32 %v183, %v260
    %265 = vst.msk [vmem:[#allocation3] sm:$0xff] %vm96, %v263
    %266 = vst.msk [vmem:[#allocation3 + $0x8] sm:$0xff] %vm96, %v264
    %v267 = vld [vmem:[#allocation4] sm:$0xff]
    %v268 = vld [vmem:[#allocation4 + $0x8] sm:$0xff]
    %v269 = vld [vmem:[#allocation11] sm:$0xff]
    %v270 = vld [vmem:[#allocation11 + $0x8] sm:$0xff]
    %v271 = vld [vmem:[#allocation11 + $0x10] sm:$0xff]
    %v272 = vld [vmem:[#allocation11 + $0x18] sm:$0xff]
    %273 = vmatprep.subr.mxu0 0.0
    %274 = vmatpush1.msra.mxu0 %v269
    %275 = vmatprep.subr.mxu0 0.0
    %276 = vmatpush1.msra.mxu0 %v270
    %277 = vmatprep.subr.mxu0 0.0
    %278 = vmatpush1.msra.mxu0 %v271
    %279 = vmatprep.subr.mxu0 0.0
    %280 = vmatpush1.msra.mxu0 %v272
    %281 = vmatprep.subr.mxu0 0.0
    %282 = vmatpush1.msra.mxu0 0.0
    %283 = vmatprep.subr.mxu0 0.0
    %284 = vmatpush1.msra.mxu0 0.0
    %285 = vmatprep.subr.mxu0 0.0
    %286 = vmatpush1.msra.mxu0 0.0
    %287 = vmatprep.subr.mxu0 0.0
    %288 = vmatpush1.msra.mxu0 0.0
    %289 = vmatprep.subr.mxu0 0.0
    %290 = vmatpush1.msra.mxu0 0.0
    %291 = vmatprep.subr.mxu0 0.0
    %292 = vmatpush1.msra.mxu0 0.0
    %293 = vmatprep.subr.mxu0 0.0
    %294 = vmatpush1.msra.mxu0 0.0
    %295 = vmatprep.subr.mxu0 0.0
    %296 = vmatpush1.msra.mxu0 0.0
    %297 = vmatprep.subr.mxu0 0.0
    %298 = vmatpush1.msra.mxu0 0.0
    %299 = vmatprep.subr.mxu0 0.0
    %300 = vmatpush1.msra.mxu0 0.0
    %301 = vmatprep.subr.mxu0 0.0
    %302 = vmatpush1.msra.mxu0 0.0
    %303 = vmatprep.subr.mxu0 0.0
    %304 = vmatpush1.msra.mxu0 0.0
    %305 = vmatprep.subr.mxu0 0.0
    %306 = vmatpush1.msra.mxu0 0.0
    %307 = vmatprep.subr.mxu0 0.0
    %308 = vmatpush1.msra.mxu0 0.0
    %309 = vmatprep.subr.mxu0 0.0
    %310 = vmatpush1.msra.mxu0 0.0
    %311 = vmatprep.subr.mxu0 0.0
    %312 = vmatpush1.msra.mxu0 0.0
    %313 = vmatprep.subr.mxu0 0.0
    %314 = vmatpush1.msra.mxu0 0.0
    %315 = vmatprep.subr.mxu0 0.0
    %316 = vmatpush1.msra.mxu0 0.0
    %317 = vmatprep.subr.mxu0 0.0
    %318 = vmatpush1.msra.mxu0 0.0
    %319 = vmatprep.subr.mxu0 0.0
    %320 = vmatpush1.msra.mxu0 0.0
    %321 = vmatprep.subr.mxu0 0.0
    %322 = vmatpush1.msra.mxu0 0.0
    %323 = vmatprep.subr.mxu0 0.0
    %324 = vmatpush1.msra.mxu0 0.0
    %325 = vmatprep.subr.mxu0 0.0
    %326 = vmatpush1.msra.mxu0 0.0
    %327 = vmatprep.subr.mxu0 0.0
    %328 = vmatpush1.msra.mxu0 0.0
    %329 = vmatprep.subr.mxu0 0.0
    %330 = vmatpush1.msra.mxu0 0.0
    %331 = vmatprep.subr.mxu0 0.0
    %332 = vmatpush1.msra.mxu0 0.0
    %333 = vmatprep.subr.mxu0 0.0
    %334 = vmatpush1.msra.mxu0 0.0
    %335 = vmatprep.subr.mxu0 0.0
    %336 = vmatpush1.msra.mxu0 0.0
    %337 = vmatprep.mubr.f32.mxu0 0.0
    %338 = vmatmul.mubr.f32.gmra.mrb[0].mxu0 %v98
    %v339 = vpop.f32.mrb[0].mxu0
    %v340 = vadd.f32 0.0, %v339
    %v341 = vpop.f32.mrb[0].mxu0
    %342 = vmatprep.mubr.f32.mxu0 0.0
    %343 = vmatmul.mubr.f32.gmra.mrb[0].mxu0 %v101
    %v344 = vpop.f32.mrb[0].mxu0
    %v345 = vadd.f32 0.0, %v344
    %v346 = vpop.f32.mrb[0].mxu0
    %347 = vdwg.mxu0
    %v348 = vadd.f32 %v267, %v340
    %v349 = vadd.f32 %v268, %v345
    %350 = vst.msk [vmem:[#allocation4] sm:$0xff] %vm96, %v348
    %351 = vst.msk [vmem:[#allocation4 + $0x8] sm:$0xff] %vm96, %v349
    // Predicated region
    $region38: #{tpu_custom_call.1} parent=1 // pred_check
      %p352 = pneg %p77
    $region39: #{tpu_custom_call.1} parent=1 // pred_check_branch
      %354 = sbr.rel (%p352) target = $region41
    $region40: #{tpu_custom_call.1} parent=1 // pred_region
      %v355 = vld [vmem:[#allocation2] sm:$0xff]
      %v356 = vld [vmem:[#allocation2 + $0x8] sm:$0xff]
      %357 = vst.msk [vmem:[#allocation13] sm:$0xff] %vm96, %v355
      %358 = vst.msk [vmem:[#allocation13 + $0x8] sm:$0xff] %vm96, %v356
      %v359 = vld [vmem:[#allocation3] sm:$0xff]
      %v360 = vld [vmem:[#allocation3 + $0x8] sm:$0xff]
      %361 = vst.msk [vmem:[#allocation14] sm:$0xff] %vm96, %v359
      %362 = vst.msk [vmem:[#allocation14 + $0x8] sm:$0xff] %vm96, %v360
      %v363 = vld [vmem:[#allocation4] sm:$0xff]
      %v364 = vld [vmem:[#allocation4 + $0x8] sm:$0xff]
      %365 = vst.msk [vmem:[#allocation16] sm:$0xff] %vm96, %v363
      %366 = vst.msk [vmem:[#allocation16 + $0x8] sm:$0xff] %vm96, %v364
    $region41: #{tpu_custom_call.1} parent=1 // pred_fallthru
      _
    // Predicated region
    $region42: #{tpu_custom_call.1} parent=1 // pred_check
      _
    $region43: #{tpu_custom_call.1} parent=1 // pred_check_branch
      %368 = sbr.rel (0) target = $region45
    $region44: #{tpu_custom_call.1} parent=1 // pred_region
      %s370 = ssub.s32 256, 256
      %371 = vsyncadd [#allocation7], %s370
      %s372 = sshll.u32 [#allocation13], 4
      %s373 = int_to_ptr.vmem [resolvable:$true] %s372
      %378 = dma.vmem_to_hbm [thread:$0]  %s373, 256, %s4, [#allocation7], 128, 128, 8
    $region45: #{tpu_custom_call.1} parent=1 // pred_fallthru
      _
    // Predicated region
    $region46: #{tpu_custom_call.1} parent=1 // pred_check
      _
    $region47: #{tpu_custom_call.1} parent=1 // pred_check_branch
      %380 = sbr.rel (0) target = $region49
    $region48: #{tpu_custom_call.1} parent=1 // pred_region
      %s382 = ssub.s32 256, 256
      %383 = vsyncadd [#allocation15], %s382
      %s384 = sshll.u32 [#allocation14], 4
      %s385 = int_to_ptr.vmem [resolvable:$true] %s384
      %390 = dma.vmem_to_hbm [thread:$0]  %s385, 256, %s5, [#allocation15], 128, 128, 8
    $region49: #{tpu_custom_call.1} parent=1 // pred_fallthru
      _
    // Predicated region
    $region50: #{tpu_custom_call.1} parent=1 // pred_check
      _
    $region51: #{tpu_custom_call.1} parent=1 // pred_check_branch
      %392 = sbr.rel (0) target = $region53
    $region52: #{tpu_custom_call.1} parent=1 // pred_region
      %s394 = ssub.s32 256, 256
      %395 = vsyncadd [#allocation15], %s394
      %s396 = sshll.u32 [#allocation16], 4
      %s397 = int_to_ptr.vmem [resolvable:$true] %s396
      %402 = dma.vmem_to_hbm [thread:$0]  %s397, 256, %s6, [#allocation15], 128, 128, 8
    $region53: #{tpu_custom_call.1} parent=1 // pred_fallthru
      _
    // Predicated region
    $region54: #{tpu_custom_call.1} parent=1 // pred_check
      _
    $region55: #{tpu_custom_call.1} parent=1 // pred_check_branch
      %404 = sbr.rel (0) target = $region57
    $region56: #{tpu_custom_call.1} parent=1 // pred_region
      %405 = dma.done [#allocation7], 256
    $region57: #{tpu_custom_call.1} parent=1 // pred_fallthru
      _
    // Predicated region
    $region58: #{tpu_custom_call.1} parent=1 // pred_check
      _
    $region59: #{tpu_custom_call.1} parent=1 // pred_check_branch
      %407 = sbr.rel (0) target = $region61
    $region60: #{tpu_custom_call.1} parent=1 // pred_region
      %408 = dma.done [#allocation15], 256
    $region61: #{tpu_custom_call.1} parent=1 // pred_fallthru
      _
    // Predicated region
    $region62: #{tpu_custom_call.1} parent=1 // pred_check
      _
    $region63: #{tpu_custom_call.1} parent=1 // pred_check_branch
      %410 = sbr.rel (0) target = $region65
    $region64: #{tpu_custom_call.1} parent=1 // pred_region
      %411 = dma.done [#allocation15], 256
    $region65: #{tpu_custom_call.1} parent=1 // pred_fallthru
      _
    %412 = vsyncpa [#allocation6], 1
    %413 = vsyncpa [#allocation9], 1
    %414 = vsyncpa [#allocation12], 1
    %415 = vsyncpa [#allocation7], 1
    %416 = vsyncpa [#allocation15], 1

</llo_original>
